<compile_context>
chip_gen: v6e
topology: v6e:2x2x1
jax: 0.10.0
libtpu: 0.0.40
codegen_flags: <defaults>
</compile_context>

<pallas_src>
import jax
import jax.numpy as jnp
from jax.experimental import pallas as pl
from jax.experimental.pallas import tpu as pltpu

# Module constants from the PyTorch source.
P = 24            # input features
HIDDEN = 5433     # hidden_nodes
OUT = 4           # output_nodes


def affine_kernel(x_ref, w_ref, b_ref, o_ref):
    """Single fused affine map: out = x @ W_eff + b_eff (everything in VMEM)."""
    y = jnp.dot(x_ref[...], w_ref[...], preferred_element_type=jnp.float32)
    o_ref[...] = (y + b_ref[...]).astype(o_ref.dtype)


@jax.jit
def regression_model_forward(x, w_eff, b_eff):
    """x: [B, P] float32; (w_eff, b_eff) from prepare_params. Returns [B, OUT]."""
    B = x.shape[0]
    vmem = pl.BlockSpec(memory_space=pltpu.MemorySpace.VMEM)
    return pl.pallas_call(
        affine_kernel,
        out_shape=jax.ShapeDtypeStruct((B, OUT), jnp.float32),
        in_specs=[vmem, vmem, vmem],   # whole arrays resident in VMEM, no grid
        out_specs=vmem,
    )(x, w_eff, b_eff)


def prepare_params(w1, b1, w2, b2):
    """One-time algebraic fold of the two bias-only Linear layers (done at
    init, NOT on the forward hot path).  Valid because RegressionModel has no
    activation between fc1 and fc2, so fc2(fc1(x)) == x @ (W1@W2) + (b1@W2 + b2).
    Weights are stored as [in_features, out_features] (transpose of PyTorch's
    nn.Linear layout, same math)."""
    w1 = w1.astype(jnp.float32)
    b1 = b1.astype(jnp.float32)
    w2 = w2.astype(jnp.float32)
    b2 = b2.astype(jnp.float32)
    w_eff = w1 @ w2                                   # [P, OUT]
    b_eff = (b1 @ w2 + b2).reshape(1, OUT)            # [1, OUT]
    return w_eff, b_eff


def init_params(key):
    """Deterministic init mimicking nn.Linear default (uniform +/- 1/sqrt(fan_in))."""
    k1, k2, k3, k4 = jax.random.split(key, 4)
    bound1 = 1.0 / jnp.sqrt(jnp.float32(P))
    bound2 = 1.0 / jnp.sqrt(jnp.float32(HIDDEN))
    w1 = jax.random.uniform(k1, (P, HIDDEN), jnp.float32, -bound1, bound1)
    b1 = jax.random.uniform(k2, (HIDDEN,), jnp.float32, -bound1, bound1)
    w2 = jax.random.uniform(k3, (HIDDEN, OUT), jnp.float32, -bound2, bound2)
    b2 = jax.random.uniform(k4, (OUT,), jnp.float32, -bound2, bound2)
    return w1, b1, w2, b2


if __name__ == "__main__":
    key = jax.random.PRNGKey(0)
    k_x, k_params = jax.random.split(key)

    B = 8  # small batch, multiple of 8 for sublane alignment
    x = jax.random.normal(k_x, (B, P), jnp.float32)
    w1, b1, w2, b2 = init_params(k_params)

    # Layer folding hoisted out of the forward path: done once here.
    w_eff, b_eff = jax.block_until_ready(prepare_params(w1, b1, w2, b2))

    out = regression_model_forward(x, w_eff, b_eff)
    out = jax.block_until_ready(out)

    # Sanity check against the exact UNFOLDED two-layer reference.
    ref = (x @ w1 + b1) @ w2 + b2
    assert out.shape == (B, OUT)
    assert jnp.allclose(out, ref, atol=1e-3, rtol=1e-3)

    print("KERNEL_OK")
</pallas_src>

<mosaic_0001>
module attributes {stable_mosaic.version = 11 : i64} {
  func.func @affine_kernel(%arg0: memref<8x24xf32, #tpu.memory_space<vmem>>, %arg1: memref<24x4xf32, #tpu.memory_space<vmem>>, %arg2: memref<1x4xf32, #tpu.memory_space<vmem>>, %arg3: memref<8x4xf32, #tpu.memory_space<vmem>>) attributes {dimension_semantics = [], scalar_prefetch = 0 : i64, scratch_operands = 0 : i64, tpu.core_type = #tpu.core_type<tc>} {
    %c0 = arith.constant 0 : index
    %c0_0 = arith.constant 0 : index
    %0 = vector.load %arg0[%c0, %c0_0] : memref<8x24xf32, #tpu.memory_space<vmem>>, vector<8x24xf32>
    %c0_1 = arith.constant 0 : index
    %c0_2 = arith.constant 0 : index
    %1 = vector.load %arg1[%c0_1, %c0_2] : memref<24x4xf32, #tpu.memory_space<vmem>>, vector<24x4xf32>
    %cst = arith.constant dense<0.000000e+00> : vector<8x4xf32>
    %2 = tpu.matmul %0, %1, %cst {dimension_numbers = #tpu.dot_dimension_numbers<[1], [0], [0], [1], [0, 0, 1, 1], [], []>} : vector<8x24xf32>, vector<24x4xf32>, vector<8x4xf32> -> vector<8x4xf32>
    %c0_3 = arith.constant 0 : index
    %c0_4 = arith.constant 0 : index
    %3 = vector.load %arg2[%c0_3, %c0_4] : memref<1x4xf32, #tpu.memory_space<vmem>>, vector<1x4xf32>
    %4 = vector.broadcast %3 : vector<1x4xf32> to vector<8x4xf32>
    %5 = arith.addf %2, %4 : vector<8x4xf32>
    %c0_5 = arith.constant 0 : index
    %c0_6 = arith.constant 0 : index
    %6 = vector.load %arg3[%c0_5, %c0_6] : memref<8x4xf32, #tpu.memory_space<vmem>>, vector<8x4xf32>
    tpu.vector_store %arg3[%c0_5, %c0_6], %5 {strides = array<i32>} : memref<8x4xf32, #tpu.memory_space<vmem>>, vector<8x4xf32>,
    return
  }
}

</mosaic_0001>

<llo_original>
// kernel: regression_model_forward.1
$region0: #{regression_model_forward.1}
  #allocation0 [shape = 'u32[]', space=smem, size = 0x4, offset = 0x4, fixed_abs, tag = 'smem constant byte address 0x4 - core index']
  #allocation1 [shape = 'u32[144,128]{1,0:T(1,128)}', space=vmem, size = 0x12000, scoped, tag = 'internal scratch']
  %s0 = inlined_call_operand.vmem [shape: f32[8,24], index: 0, kind: input, shape index: {}]
  %s1 = inlined_call_operand.vmem [shape: f32[24,4], index: 1, kind: input, shape index: {}]
  %s2 = inlined_call_operand.vmem [shape: f32[1,4], index: 2, kind: input, shape index: {}]
  %s3 = inlined_call_operand.vmem [shape: f32[8,4], index: 3, kind: output, shape index: {}]
  %s4 = sld [smem:[#allocation0]]
  $region22: #{regression_model_forward.1} parent=0
    _
  %s6 = ssub.s32 1, %s4
  %s7 = scalar_select 0, %s6, %s4
  // Predicated region
  $region2: #{regression_model_forward.1} parent=0 // pred_check
    _
  $region3: #{regression_model_forward.1} parent=0 // pred_check_branch
    %9 = sbr.rel (0) target = $region5
  $region4: #{regression_model_forward.1} parent=0 // pred_region
    _
  $region5: #{regression_model_forward.1} parent=0 // pred_fallthru
    _
  // Predicated region
  $region6: #{regression_model_forward.1} parent=0 // pred_check
    _
  $region7: #{regression_model_forward.1} parent=0 // pred_check_branch
    %11 = sbr.rel (0) target = $region9
  $region8: #{regression_model_forward.1} parent=0 // pred_region
    _
  $region9: #{regression_model_forward.1} parent=0 // pred_fallthru
    _
  // Predicated region
  $region10: #{regression_model_forward.1} parent=0 // pred_check
    _
  $region11: #{regression_model_forward.1} parent=0 // pred_check_branch
    %13 = sbr.rel (0) target = $region13
  $region12: #{regression_model_forward.1} parent=0 // pred_region
    _
  $region13: #{regression_model_forward.1} parent=0 // pred_fallthru
    _
  %v14 = vld [vmem:[%s0] sm:$0xff]
  %v15 = vld [vmem:[%s1] sm:$0xff]
  %v16 = vld [vmem:[%s1 + $0x8] sm:$0xff]
  %v17 = vld [vmem:[%s1 + $0x10] sm:$0xff]
  %v18 = vld [vmem:[%s2] sm:$0x1]
  %v20 = vlaneseq
  %v21 = vshrl.u32 %v20, 7
  %v22 = vsub.s32 0, %v21
  %v23 = vrot.slane %v18, %v22
  %vm25 = vcmask 195584
  %v27 = vsel %vm25, %v14, 0
  %29 = vmatprep.subr.mxu0 0.0
  %30 = vmatpush1.msra.mxu0 0.0
  %31 = vmatprep.subr.mxu0 0.0
  %32 = vmatpush1.msra.mxu0 0.0
  %33 = vmatprep.subr.mxu0 0.0
  %34 = vmatpush1.msra.mxu0 0.0
  %35 = vmatprep.subr.mxu0 0.0
  %36 = vmatpush1.msra.mxu0 0.0
  %37 = vmatprep.subr.mxu0 0.0
  %38 = vmatpush1.msra.mxu0 0.0
  %39 = vmatprep.subr.mxu0 0.0
  %40 = vmatpush1.msra.mxu0 0.0
  %41 = vmatprep.subr.mxu0 0.0
  %42 = vmatpush1.msra.mxu0 0.0
  %43 = vmatprep.subr.mxu0 0.0
  %44 = vmatpush1.msra.mxu0 0.0
  %45 = vmatprep.subr.mxu0 0.0
  %46 = vmatpush1.msra.mxu0 0.0
  %47 = vmatprep.subr.mxu0 0.0
  %48 = vmatpush1.msra.mxu0 0.0
  %49 = vmatprep.subr.mxu0 0.0
  %50 = vmatpush1.msra.mxu0 0.0
  %51 = vmatprep.subr.mxu0 0.0
  %52 = vmatpush1.msra.mxu0 0.0
  %53 = vmatprep.subr.mxu0 0.0
  %54 = vmatpush1.msra.mxu0 0.0
  %55 = vmatprep.subr.mxu0 0.0
  %56 = vmatpush1.msra.mxu0 %v17
  %57 = vmatprep.subr.mxu0 0.0
  %58 = vmatpush1.msra.mxu0 %v16
  %59 = vmatprep.subr.mxu0 0.0
  %60 = vmatpush1.msra.mxu0 %v15
  %61 = vmatprep.subr.mxu0 0.0
  %62 = vmatpush2.msra.mxu0 0.0
  %63 = vmatprep.subr.mxu0 0.0
  %64 = vmatpush2.msra.mxu0 0.0
  %65 = vmatprep.subr.mxu0 0.0
  %66 = vmatpush2.msra.mxu0 0.0
  %67 = vmatprep.subr.mxu0 0.0
  %68 = vmatpush2.msra.mxu0 0.0
  %69 = vmatprep.subr.mxu0 0.0
  %70 = vmatpush2.msra.mxu0 0.0
  %71 = vmatprep.subr.mxu0 0.0
  %72 = vmatpush2.msra.mxu0 0.0
  %73 = vmatprep.subr.mxu0 0.0
  %74 = vmatpush2.msra.mxu0 0.0
  %75 = vmatprep.subr.mxu0 0.0
  %76 = vmatpush2.msra.mxu0 0.0
  %77 = vmatprep.subr.mxu0 0.0
  %78 = vmatpush2.msra.mxu0 0.0
  %79 = vmatprep.subr.mxu0 0.0
  %80 = vmatpush2.msra.mxu0 0.0
  %81 = vmatprep.subr.mxu0 0.0
  %82 = vmatpush2.msra.mxu0 0.0
  %83 = vmatprep.subr.mxu0 0.0
  %84 = vmatpush2.msra.mxu0 0.0
  %85 = vmatprep.subr.mxu0 0.0
  %86 = vmatpush2.msra.mxu0 0.0
  %87 = vmatprep.subr.mxu0 0.0
  %88 = vmatpush2.msra.mxu0 0.0
  %89 = vmatprep.subr.mxu0 0.0
  %90 = vmatpush2.msra.mxu0 0.0
  %91 = vmatprep.subr.mxu0 0.0
  %92 = vmatpush2.msra.mxu0 0.0
  %93 = vmatprep.mubr.f32.mxu0 0.0
  %94 = vmatmul.mubr.f32.gmra.mxu0 %v27
  %v95 = vpop.f32.mrf.mxu0
  %v96 = vadd.f32 %v23, %v95
  %v97 = vpop.f32.mrf.mxu0
  %98 = vdwg.mxu0
  %vm99 = vcmask 31744
  %100 = vst.msk [vmem:[%s3] sm:$0xff] %vm99, %v96
  // Predicated region
  $region14: #{regression_model_forward.1} parent=0 // pred_check
    _
  $region15: #{regression_model_forward.1} parent=0 // pred_check_branch
    %102 = sbr.rel (0) target = $region17
  $region16: #{regression_model_forward.1} parent=0 // pred_region
    _
  $region17: #{regression_model_forward.1} parent=0 // pred_fallthru
    _
  // Predicated region
  $region18: #{regression_model_forward.1} parent=0 // pred_check
    _
  $region19: #{regression_model_forward.1} parent=0 // pred_check_branch
    %104 = sbr.rel (0) target = $region21
  $region20: #{regression_model_forward.1} parent=0 // pred_region
    _
  $region21: #{regression_model_forward.1} parent=0 // pred_fallthru
    _

</llo_original>
